<compile_context>
chip_gen: v7x
topology: tpu7x:2x2x1
jax: 0.10.0
libtpu: 0.0.40
codegen_flags: <defaults>
</compile_context>

<pallas_src>
import jax
import jax.numpy as jnp
from jax.experimental import pallas as pl
from jax.experimental.pallas import tpu as pltpu

_LANES = 128


def _drop_path_kernel(scale_ref, x_ref, o_ref):
    # scale_ref: (tr, 1) f32 per-row scale in {0, 1/keep_prob}; x_ref/o_ref: (tr, 128) tiles.
    o_ref[...] = x_ref[...] * scale_ref[...].astype(x_ref.dtype)


def _round_up(x, m):
    return ((x + m - 1) // m) * m


def _row_granularity(dtype):
    itemsize = jnp.dtype(dtype).itemsize
    if itemsize >= 4:
        return 8
    if itemsize == 2:
        return 16
    return 32


def _pick_row_tile(total_rows, row_bytes, gran, target_bytes=4 * 1024 * 1024):
    """Byte-targeted row tile (multiple of the dtype sublane granularity). The grid uses
    cdiv, so the tail block may be partial — Pallas masks it."""
    tr = max(int(target_bytes // max(row_bytes, 1)), 1)
    tr = max((tr // gran) * gran, gran)
    tr = min(tr, _round_up(total_rows, gran))
    # v7x megacore: prefer an even number of "parallel" grid steps when there is > 1 block.
    nb = pl.cdiv(total_rows, tr)
    if nb > 1 and nb % 2 == 1:
        tr_even = _round_up(pl.cdiv(total_rows, nb + 1), gran)
        if tr_even >= gran:
            tr = tr_even
    return tr


def drop_path(x, drop_prob, *, key=None, seed=0, training=True):
    """Pallas DropPath. x: (B, ...) — per-sample mask broadcast over trailing dims.

    Pass a fresh `key` (or `seed`) per training step; otherwise the same mask repeats.
    """
    if drop_prob is None or float(drop_prob) == 0.0 or not training:
        return x
    drop_prob = float(drop_prob)
    keep_prob = 1.0 - drop_prob

    orig_shape = x.shape
    B = int(orig_shape[0])
    L = 1
    for d in orig_shape[1:]:
        L *= int(d)
    if B == 0 or L == 0:
        return x

    # Per-sample Bernoulli -> f32 scale in {0, 1/keep_prob}, drawn once in the wrapper.
    if key is None:
        key = jax.random.PRNGKey(seed)
    u = jax.random.uniform(key, (B,), dtype=jnp.float32)
    # floor(keep_prob + u) == 1  <=>  u >= drop_prob
    scale = jnp.where(u >= jnp.float32(drop_prob),
                      jnp.float32(1.0 / keep_prob), jnp.float32(0.0))

    # Lane-dense working layout: pad flattened sample dims to a 128-lane multiple, then
    # collapse (batch, rows) into a single row axis so one block spans many samples.
    L_pad = _round_up(L, _LANES)
    x_flat = x.reshape(B, L)
    if L_pad != L:
        x_flat = jnp.pad(x_flat, ((0, 0), (0, L_pad - L)))
    R = L_pad // _LANES
    total_rows = B * R
    x_work = x_flat.reshape(total_rows, _LANES)
    scale_rows = jnp.broadcast_to(scale[:, None], (B, R)).reshape(total_rows, 1)

    itemsize = jnp.dtype(x.dtype).itemsize
    gran = _row_granularity(x.dtype)
    tr = _pick_row_tile(total_rows, _LANES * itemsize, gran)
    num_blocks = pl.cdiv(total_rows, tr)

    out = pl.pallas_call(
        _drop_path_kernel,
        out_shape=jax.ShapeDtypeStruct((total_rows, _LANES), x.dtype),
        grid_spec=pltpu.PrefetchScalarGridSpec(
            num_scalar_prefetch=0,
            grid=(num_blocks,),
            in_specs=[
                pl.BlockSpec((tr, 1), lambda i: (i, 0)),        # per-row scale (tiny)
                pl.BlockSpec((tr, _LANES), lambda i: (i, 0)),   # x tile (~4 MiB target)
            ],
            out_specs=pl.BlockSpec((tr, _LANES), lambda i: (i, 0)),
        ),
        compiler_params=pltpu.CompilerParams(
            dimension_semantics=("parallel",),
            vmem_limit_bytes=32 * 1024 * 1024,
        ),
        # TODO(synk): add input_output_aliases={1: 0} when callers guarantee x is not reused.
    )(scale_rows, x_work)

    out = out.reshape(B, L_pad)
    if L_pad != L:
        out = out[:, :L]
    return out.reshape(orig_shape)


class DropPath:
    """Mirror of the PyTorch module (no parameters)."""

    def __init__(self, drop_prob=None):
        self.drop_prob = drop_prob
        self.training = True

    def __call__(self, x, *, key=None, seed=0):
        return drop_path(x, self.drop_prob, key=key, seed=seed, training=self.training)

    def extra_repr(self):
        return "p={}".format(self.drop_prob)


if __name__ == "__main__":
    key = jax.random.PRNGKey(0)
    B, N, D = 2, 8, 32
    x = jax.random.normal(key, (B, N, D), dtype=jnp.float32)

    module = DropPath(drop_prob=0.25)
    out = jax.block_until_ready(module(x, seed=0))
    assert out.shape == x.shape and out.dtype == x.dtype

    # Sanity: each sample must be exactly zero OR x / keep_prob.
    keep_prob = 1.0 - 0.25
    for b in range(B):
        sample = out[b]
        is_zero = bool(jnp.all(sample == 0.0))
        is_scaled = bool(jnp.allclose(sample, x[b] / keep_prob, atol=1e-5, rtol=1e-5))
        assert is_zero or is_scaled, "DropPath output is neither dropped nor correctly scaled"

    # Non-128-divisible trailing size exercises the lane-padding path.
    x2 = jax.random.normal(jax.random.PRNGKey(1), (2, 3, 5, 7), dtype=jnp.float32)
    out2 = jax.block_until_ready(drop_path(x2, 0.5, seed=3))
    assert out2.shape == x2.shape and out2.dtype == x2.dtype
    for b in range(2):
        s = out2[b]
        ok = bool(jnp.all(s == 0.0)) or bool(
            jnp.allclose(s, x2[b] / 0.5, atol=1e-5, rtol=1e-5))
        assert ok, "padded-path DropPath output is neither dropped nor correctly scaled"

    # Eval mode / drop_prob=0 path returns x unchanged (no kernel launch).
    module.training = False
    out_eval = jax.block_until_ready(module(x))
    assert bool(jnp.all(out_eval == x))

    print("KERNEL_OK")
</pallas_src>

<mosaic_0001>
module attributes {stable_mosaic.version = 11 : i64} {
  func.func @_drop_path_kernel(%arg0: i32, %arg1: memref<8x1xf32, #tpu.memory_space<vmem>>, %arg2: memref<8x128xf32, #tpu.memory_space<vmem>>, %arg3: memref<8x128xf32, #tpu.memory_space<vmem>>) attributes {dimension_semantics = [#tpu.dimension_semantics<parallel>], iteration_bounds = array<i64: 1>, scalar_prefetch = 0 : i64, scratch_operands = 0 : i64, tpu.core_type = #tpu.core_type<tc>, window_params = [{transform_indices = @transform_0, window_bounds = array<i64: 8, 1>}, {transform_indices = @transform_1, window_bounds = array<i64: 8, 128>}, {transform_indices = @transform_2, window_bounds = array<i64: 8, 128>}]} {
    %c0 = arith.constant 0 : index
    %c0_0 = arith.constant 0 : index
    %0 = vector.load %arg2[%c0, %c0_0] : memref<8x128xf32, #tpu.memory_space<vmem>>, vector<8x128xf32>
    %c0_1 = arith.constant 0 : index
    %c0_2 = arith.constant 0 : index
    %1 = vector.load %arg1[%c0_1, %c0_2] : memref<8x1xf32, #tpu.memory_space<vmem>>, vector<8x1xf32>
    %2 = vector.broadcast %1 : vector<8x1xf32> to vector<8x128xf32>
    %3 = arith.mulf %0, %2 : vector<8x128xf32>
    %c0_3 = arith.constant 0 : index
    %c0_4 = arith.constant 0 : index
    %4 = vector.load %arg3[%c0_3, %c0_4] : memref<8x128xf32, #tpu.memory_space<vmem>>, vector<8x128xf32>
    tpu.vector_store %arg3[%c0_3, %c0_4], %3 {strides = array<i32>} : memref<8x128xf32, #tpu.memory_space<vmem>>, vector<8x128xf32>,
    return
  }
  func.func @transform_0(%arg0: i32) -> (i32, i32) {
    %c0_i32 = arith.constant 0 : i32
    %c0_i32_0 = arith.constant 0 : i32
    return %arg0, %c0_i32 : i32, i32
  }
  func.func @transform_1(%arg0: i32) -> (i32, i32) {
    %c0_i32 = arith.constant 0 : i32
    %c0_i32_0 = arith.constant 0 : i32
    return %arg0, %c0_i32 : i32, i32
  }
  func.func @transform_2(%arg0: i32) -> (i32, i32) {
    %c0_i32 = arith.constant 0 : i32
    %c0_i32_0 = arith.constant 0 : i32
    return %arg0, %c0_i32 : i32, i32
  }
}

</mosaic_0001>

<llo_original>
// kernel: tpu_custom_call.1
$region0: #{tpu_custom_call.1}
  #allocation0 [shape = 'u32[]', space=smem, size = 0x4, offset = 0x4, fixed_abs, tag = 'smem constant byte address 0x4 - core index']
  #allocation1 [shape = 'u32[144,128]{1,0:T(1,128)}', space=vmem, size = 0x12000, scoped, tag = 'internal scratch']
  %s0 = inlined_call_operand.vmem [shape: f32[4,1], index: 0, kind: input, shape index: {}]
  %s1 = inlined_call_operand.vmem [shape: f32[4,128], index: 1, kind: input, shape index: {}]
  %s2 = inlined_call_operand.hbm [shape: f32[4,128], index: 2, kind: output, shape index: {}]
  %s3 = sld [smem:[#allocation0]]
  $region18: #{tpu_custom_call.1} parent=0
    _
  %s5 = ssub.s32 1, %s3
  %s6 = scalar_select 0, %s5, %s3
  $region1: #{tpu_custom_call.1} parent=0
    #allocation2 [shape = 'u8[4096]{0}', space=vmem, size = 0x1000, scoped, tag = 'output window, operand 0, single buffered']
    #allocation3 [shape = 's32[1]{0}', space=sflag, size = 0x4, scoped, tag = 'scoped memory for tpu_custom_call.1']
    %7 = vsyncpa [#allocation3], 0
    // Predicated region
    $region2: #{tpu_custom_call.1} parent=1 // pred_check
      _
    $region3: #{tpu_custom_call.1} parent=1 // pred_check_branch
      %9 = sbr.rel (0) target = $region5
    $region4: #{tpu_custom_call.1} parent=1 // pred_region
      _
    $region5: #{tpu_custom_call.1} parent=1 // pred_fallthru
      _
    // Predicated region
    $region6: #{tpu_custom_call.1} parent=1 // pred_check
      _
    $region7: #{tpu_custom_call.1} parent=1 // pred_check_branch
      %11 = sbr.rel (0) target = $region9
    $region8: #{tpu_custom_call.1} parent=1 // pred_region
      _
    $region9: #{tpu_custom_call.1} parent=1 // pred_fallthru
      _
    %v12 = vld [vmem:[%s1] sm:$0xff]
    %v13 = vld [vmem:[%s0] sm:$0xff]
    %15 = vset.pattern.permute.xlu0 0
    %16 = vperm.xlu0 %15, %v13
    %v17 = vpop.permute.xlu0 %16
    %v19 = vmul.f32 %v12, %v17
    %20 = vst [vmem:[#allocation2] sm:$0xff] %v19
    // Predicated region
    $region10: #{tpu_custom_call.1} parent=1 // pred_check
      _
    $region11: #{tpu_custom_call.1} parent=1 // pred_check_branch
      %22 = sbr.rel (0) target = $region13
    $region12: #{tpu_custom_call.1} parent=1 // pred_region
      %s24 = ssub.s32 128, 64
      %25 = vsyncadd [#allocation3], %s24
      %s26 = sshll.u32 [#allocation2], 4
      %s27 = int_to_ptr.vmem [resolvable:$true] %s26
      %32 = dma.vmem_to_hbm [thread:$0]  %s27, 64, %s2, [#allocation3], 64, 64, 4
    $region13: #{tpu_custom_call.1} parent=1 // pred_fallthru
      _
    // Predicated region
    $region14: #{tpu_custom_call.1} parent=1 // pred_check
      _
    $region15: #{tpu_custom_call.1} parent=1 // pred_check_branch
      %34 = sbr.rel (0) target = $region17
    $region16: #{tpu_custom_call.1} parent=1 // pred_region
      %35 = dma.done [#allocation3], 128
    $region17: #{tpu_custom_call.1} parent=1 // pred_fallthru
      _
    %36 = vsyncpa [#allocation3], 1

</llo_original>
